<compile_context>
chip_gen: v6e
topology: v6e:2x2x1
jax: 0.10.0
libtpu: 0.0.40
codegen_flags: <defaults>
</compile_context>

<pallas_src>
import jax
import jax.numpy as jnp
from jax import lax
from jax.experimental import pallas as pl
from jax.experimental.pallas import tpu as pltpu

_SUBLANE = 8
_LANE = 128


def _round_up(x: int, m: int) -> int:
    return ((x + m - 1) // m) * m


def _dual_tensorcore() -> bool:
    """True only on generations with 2 TensorCores per device (v4/v5p/v7x)."""
    try:
        kind = jax.devices()[0].device_kind.lower()
    except Exception:
        return False
    if any(tag in kind for tag in ("v5e", "v6e", "lite", "trillium")):
        return False
    return any(tag in kind for tag in ("v4", "v5p", "v7"))


def _pick_batch_tile(B: int, batch_tile: int, dual_tc: bool) -> int:
    bt = max(_SUBLANE, min(batch_tile, _round_up(B, _SUBLANE)))
    if dual_tc and B >= 2048:
        # Balanced, even step count so both TensorCores stream full tiles; each
        # half is >= ~1024 rows so per-step DMA efficiency stays high.
        n_steps = max(2, -(-B // bt))
        if n_steps % 2:
            n_steps += 1
        bt = _round_up(-(-B // n_steps), _LANE)
    return bt


def rho_kernel(x_ref, w1_ref, b1_ref, w2_ref, b2_ref, o_ref):
    # In-kernel cast to the compute dtype: pure VPU filler under the DMA stream.
    x = x_ref[...].astype(w1_ref.dtype)
    # fc1: (bt, IN) . (OUT, IN) contracted on IN -> (bt, OUT); f32 MXU accum.
    # Mosaic performs the small tile transpose on the XLU (free slot here).
    h = lax.dot_general(x, w1_ref[...], (((1,), (1,)), ((), ())),
                        preferred_element_type=jnp.float32)
    # Bias + ReLU epilogue in f32 (v5e VPU has no bf16 ALUs).
    h = jnp.maximum(h + b1_ref[...], 0.0)
    # Dropout: eval mode -> identity.
    # TODO(synk): training-mode dropout (pltpu.prng_random_bits mask + 1/(1-p) scale) not emitted.
    # fc2: (bt, OUT) . (OUT, OUT) contracted on OUT -> (bt, OUT).
    y = lax.dot_general(h.astype(w2_ref.dtype), w2_ref[...], (((1,), (1,)), ((), ())),
                        preferred_element_type=jnp.float32)
    o_ref[...] = (y + b2_ref[...]).astype(o_ref.dtype)


def rho_forward(x, w1, b1, w2, b2, *, batch_tile=8192,
                compute_dtype=jnp.bfloat16, out_dtype=None):
    """DeepSets rho forward.

    x: (B, in); w1: (out, in); b1: (out,); w2: (out, out); b2: (out,).
    Returns (B, out) in the module's natural layout (no post-transpose).
    compute_dtype=jnp.float32 gives the exact PyTorch path; the default bf16
    fast path keeps f32 MXU accumulation + f32 bias/ReLU and emits bf16 output.
    NOTE: for tiny batches (< a few thousand rows) a plain XLA dot-relu-dot, or
    fusing rho into the producing phi/pooling kernel, is cheaper than a
    standalone pallas_call; this entry point targets the large-B regime.
    """
    B, IN = x.shape
    OUT = w1.shape[0]
    compute_dtype = jnp.dtype(compute_dtype)
    out_dtype = compute_dtype if out_dtype is None else jnp.dtype(out_dtype)

    bt = _pick_batch_tile(B, batch_tile, _dual_tensorcore())
    grid = (pl.cdiv(B, bt),)

    # Weights are tiny (OUT*IN + OUT*OUT elements); wrapper cast is negligible.
    w1c = w1.astype(compute_dtype)                    # (OUT, IN)
    w2c = w2.astype(compute_dtype)                    # (OUT, OUT)
    b1c = b1.astype(jnp.float32).reshape(1, OUT)      # broadcast over batch rows
    b2c = b2.astype(jnp.float32).reshape(1, OUT)

    flops = 2 * B * (IN * OUT + OUT * OUT)
    bytes_accessed = (
        x.size * x.dtype.itemsize
        + w1c.size * w1c.dtype.itemsize
        + w2c.size * w2c.dtype.itemsize
        + (b1c.size + b2c.size) * 4
        + B * OUT * out_dtype.itemsize
    )

    return pl.pallas_call(
        rho_kernel,
        out_shape=jax.ShapeDtypeStruct((B, OUT), out_dtype),
        grid_spec=pltpu.PrefetchScalarGridSpec(
            num_scalar_prefetch=0,
            grid=grid,
            in_specs=[
                pl.BlockSpec((bt, IN), lambda i: (i, 0)),    # X tile, natural layout
                pl.BlockSpec((OUT, IN), lambda i: (0, 0)),   # W1 (grid-invariant)
                pl.BlockSpec((1, OUT), lambda i: (0, 0)),    # b1
                pl.BlockSpec((OUT, OUT), lambda i: (0, 0)),  # W2 (grid-invariant)
                pl.BlockSpec((1, OUT), lambda i: (0, 0)),    # b2
            ],
            out_specs=pl.BlockSpec((bt, OUT), lambda i: (i, 0)),
        ),
        compiler_params=pltpu.CompilerParams(
            dimension_semantics=("parallel",),
        ),
        cost_estimate=pl.CostEstimate(
            flops=flops, transcendentals=0, bytes_accessed=bytes_accessed),
    )(x, w1c, b1c, w2c, b2c)


if __name__ == "__main__":
    # RhoConfig: in_features=32 (== PhiConfig out_features), out_features=16.
    B, IN, OUT = 8, 32, 16

    key = jax.random.PRNGKey(0)
    k_x, k_w1, k_b1, k_w2, k_b2, k_x2 = jax.random.split(key, 6)

    x = jax.random.normal(k_x, (B, IN), dtype=jnp.float32)

    # PyTorch Linear layout: W (out, in), b (out,).
    w1 = jax.random.uniform(k_w1, (OUT, IN), jnp.float32, -1.0, 1.0) / jnp.sqrt(IN)
    b1 = jax.random.uniform(k_b1, (OUT,), jnp.float32, -1.0, 1.0) / jnp.sqrt(IN)
    w2 = jax.random.uniform(k_w2, (OUT, OUT), jnp.float32, -1.0, 1.0) / jnp.sqrt(OUT)
    b2 = jax.random.uniform(k_b2, (OUT,), jnp.float32, -1.0, 1.0) / jnp.sqrt(OUT)

    # Pure-JAX reference (eval-mode dropout == identity).
    ref = jnp.maximum(x @ w1.T + b1, 0.0) @ w2.T + b2

    # Exact path: f32 compute + f32 output must match tightly.
    out_f32 = jax.block_until_ready(
        rho_forward(x, w1, b1, w2, b2, compute_dtype=jnp.float32))
    assert out_f32.shape == (B, OUT) and out_f32.dtype == jnp.float32
    assert jnp.allclose(out_f32, ref, atol=1e-5, rtol=1e-5)

    # Fast path: bf16 weights/activations/output, f32 accumulation + epilogue.
    out_bf16 = jax.block_until_ready(rho_forward(x, w1, b1, w2, b2))
    assert out_bf16.shape == (B, OUT) and out_bf16.dtype == jnp.bfloat16
    assert jnp.allclose(out_bf16.astype(jnp.float32), ref, atol=5e-2, rtol=5e-2)

    # Batch not divisible by the tile: exercises the cdiv grid / partial last
    # block (no wrapper padding pass) and a multi-step "parallel" grid.
    B2 = 300
    x2 = jax.random.normal(k_x2, (B2, IN), dtype=jnp.float32)
    ref2 = jnp.maximum(x2 @ w1.T + b1, 0.0) @ w2.T + b2
    out2 = jax.block_until_ready(
        rho_forward(x2, w1, b1, w2, b2, compute_dtype=jnp.float32,
                    batch_tile=256))
    assert out2.shape == (B2, OUT)
    assert jnp.allclose(out2, ref2, atol=1e-5, rtol=1e-5)

    print("KERNEL_OK")
</pallas_src>

<mosaic_0001>
module attributes {stable_mosaic.version = 11 : i64} {
  func.func @rho_kernel(%arg0: i32, %arg1: memref<8x32xf32, #tpu.memory_space<vmem>>, %arg2: memref<16x32xf32, #tpu.memory_space<vmem>>, %arg3: memref<1x16xf32, #tpu.memory_space<vmem>>, %arg4: memref<16x16xf32, #tpu.memory_space<vmem>>, %arg5: memref<1x16xf32, #tpu.memory_space<vmem>>, %arg6: memref<8x16xf32, #tpu.memory_space<vmem>>) attributes {dimension_semantics = [#tpu.dimension_semantics<parallel>], iteration_bounds = array<i64: 1>, scalar_prefetch = 0 : i64, scratch_operands = 0 : i64, tpu.core_type = #tpu.core_type<tc>, window_params = [{transform_indices = @transform_0, window_bounds = array<i64: 8, 32>}, {pipeline_mode = #tpu.pipeline_mode<synchronous>, transform_indices = @transform_1, window_bounds = array<i64: 16, 32>}, {pipeline_mode = #tpu.pipeline_mode<synchronous>, transform_indices = @transform_2, window_bounds = array<i64: 1, 16>}, {pipeline_mode = #tpu.pipeline_mode<synchronous>, transform_indices = @transform_3, window_bounds = array<i64: 16, 16>}, {pipeline_mode = #tpu.pipeline_mode<synchronous>, transform_indices = @transform_4, window_bounds = array<i64: 1, 16>}, {transform_indices = @transform_5, window_bounds = array<i64: 8, 16>}]} {
    %c0 = arith.constant 0 : index
    %c0_0 = arith.constant 0 : index
    %0 = vector.load %arg1[%c0, %c0_0] : memref<8x32xf32, #tpu.memory_space<vmem>>, vector<8x32xf32>
    %c0_1 = arith.constant 0 : index
    %c0_2 = arith.constant 0 : index
    %1 = vector.load %arg2[%c0_1, %c0_2] : memref<16x32xf32, #tpu.memory_space<vmem>>, vector<16x32xf32>
    %cst = arith.constant dense<0.000000e+00> : vector<8x16xf32>
    %2 = tpu.matmul %0, %1, %cst {dimension_numbers = #tpu.dot_dimension_numbers<[1], [1], [0], [0], [0, 0, 1, 0], [], []>} : vector<8x32xf32>, vector<16x32xf32>, vector<8x16xf32> -> vector<8x16xf32>
    %c0_3 = arith.constant 0 : index
    %c0_4 = arith.constant 0 : index
    %3 = vector.load %arg3[%c0_3, %c0_4] : memref<1x16xf32, #tpu.memory_space<vmem>>, vector<1x16xf32>
    %4 = vector.broadcast %3 : vector<1x16xf32> to vector<8x16xf32>
    %5 = arith.addf %2, %4 : vector<8x16xf32>
    %cst_5 = arith.constant 0.000000e+00 : f32
    %6 = vector.broadcast %cst_5 : f32 to vector<8x16xf32>
    %7 = arith.maximumf %5, %6 : vector<8x16xf32>
    %c0_6 = arith.constant 0 : index
    %c0_7 = arith.constant 0 : index
    %8 = vector.load %arg4[%c0_6, %c0_7] : memref<16x16xf32, #tpu.memory_space<vmem>>, vector<16x16xf32>
    %cst_8 = arith.constant dense<0.000000e+00> : vector<8x16xf32>
    %9 = tpu.matmul %7, %8, %cst_8 {dimension_numbers = #tpu.dot_dimension_numbers<[1], [1], [0], [0], [0, 0, 1, 0], [], []>} : vector<8x16xf32>, vector<16x16xf32>, vector<8x16xf32> -> vector<8x16xf32>
    %c0_9 = arith.constant 0 : index
    %c0_10 = arith.constant 0 : index
    %10 = vector.load %arg5[%c0_9, %c0_10] : memref<1x16xf32, #tpu.memory_space<vmem>>, vector<1x16xf32>
    %11 = vector.broadcast %10 : vector<1x16xf32> to vector<8x16xf32>
    %12 = arith.addf %9, %11 : vector<8x16xf32>
    %c0_11 = arith.constant 0 : index
    %c0_12 = arith.constant 0 : index
    %13 = vector.load %arg6[%c0_11, %c0_12] : memref<8x16xf32, #tpu.memory_space<vmem>>, vector<8x16xf32>
    tpu.vector_store %arg6[%c0_11, %c0_12], %12 {strides = array<i32>} : memref<8x16xf32, #tpu.memory_space<vmem>>, vector<8x16xf32>,
    return
  }
  func.func @transform_0(%arg0: i32) -> (i32, i32) {
    %c0_i32 = arith.constant 0 : i32
    %c0_i32_0 = arith.constant 0 : i32
    return %arg0, %c0_i32 : i32, i32
  }
  func.func @transform_1(%arg0: i32) -> (i32, i32) {
    %c0_i32 = arith.constant 0 : i32
    %c0_i32_0 = arith.constant 0 : i32
    %c0_i32_1 = arith.constant 0 : i32
    return %c0_i32, %c0_i32_0 : i32, i32
  }
  func.func @transform_2(%arg0: i32) -> (i32, i32) {
    %c0_i32 = arith.constant 0 : i32
    %c0_i32_0 = arith.constant 0 : i32
    %c0_i32_1 = arith.constant 0 : i32
    return %c0_i32, %c0_i32_0 : i32, i32
  }
  func.func @transform_3(%arg0: i32) -> (i32, i32) {
    %c0_i32 = arith.constant 0 : i32
    %c0_i32_0 = arith.constant 0 : i32
    %c0_i32_1 = arith.constant 0 : i32
    return %c0_i32, %c0_i32_0 : i32, i32
  }
  func.func @transform_4(%arg0: i32) -> (i32, i32) {
    %c0_i32 = arith.constant 0 : i32
    %c0_i32_0 = arith.constant 0 : i32
    %c0_i32_1 = arith.constant 0 : i32
    return %c0_i32, %c0_i32_0 : i32, i32
  }
  func.func @transform_5(%arg0: i32) -> (i32, i32) {
    %c0_i32 = arith.constant 0 : i32
    %c0_i32_0 = arith.constant 0 : i32
    return %arg0, %c0_i32 : i32, i32
  }
}

</mosaic_0001>

<llo_original>
// kernel: tpu_custom_call.1
$region0: #{tpu_custom_call.1}
  #allocation0 [shape = 'u32[]', space=smem, size = 0x4, offset = 0x4, fixed_abs, tag = 'smem constant byte address 0x4 - core index']
  #allocation1 [shape = 'u32[144,128]{1,0:T(1,128)}', space=vmem, size = 0x12000, scoped, tag = 'internal scratch']
  %s0 = inlined_call_operand.hbm [shape: f32[8,32], index: 0, kind: input, shape index: {}]
  %s1 = inlined_call_operand.hbm [shape: f32[16,32], index: 1, kind: input, shape index: {}]
  %s2 = inlined_call_operand.vmem [shape: f32[1,16], index: 2, kind: input, shape index: {}]
  %s3 = inlined_call_operand.hbm [shape: f32[16,16], index: 3, kind: input, shape index: {}]
  %s4 = inlined_call_operand.vmem [shape: f32[1,16], index: 4, kind: input, shape index: {}]
  %s5 = inlined_call_operand.hbm [shape: f32[8,16], index: 5, kind: output, shape index: {}]
  %s6 = sld [smem:[#allocation0]]
  $region42: #{tpu_custom_call.1} parent=0
    _
  %s8 = ssub.s32 1, %s6
  %s9 = scalar_select 0, %s8, %s6
  $region1: #{tpu_custom_call.1} parent=0
    #allocation2 [shape = 'u8[4096]{0}', space=vmem, size = 0x1000, scoped, tag = 'input window, operand 0, single buffered']
    #allocation3 [shape = 's32[1]{0}', space=sflag, size = 0x4, scoped, tag = 'scoped memory for tpu_custom_call.1']
    #allocation4 [shape = 's32[1]{0}', space=sflag, size = 0x4, scoped, tag = 'scoped memory for tpu_custom_call.1']
    #allocation5 [shape = 'u8[8192]{0}', space=vmem, size = 0x2000, scoped, tag = 'input window, operand 1, single buffered']
    #allocation6 [shape = 's32[1]{0}', space=sflag, size = 0x4, scoped, tag = 'scoped memory for tpu_custom_call.1']
    #allocation7 [shape = 'u8[8192]{0}', space=vmem, size = 0x2000, scoped, tag = 'input window, operand 3, single buffered']
    #allocation8 [shape = 'u8[4096]{0}', space=vmem, size = 0x1000, scoped, tag = 'output window, operand 0, single buffered']
    %10 = vsyncpa [#allocation3], 0
    %11 = vsyncpa [#allocation6], 0
    %12 = vsyncpa [#allocation4], 0
    // Predicated region
    $region2: #{tpu_custom_call.1} parent=1 // pred_check
      _
    $region3: #{tpu_custom_call.1} parent=1 // pred_check_branch
      %14 = sbr.rel (0) target = $region5
    $region4: #{tpu_custom_call.1} parent=1 // pred_region
      %s16 = ssub.s32 128, 128
      %17 = vsyncadd [#allocation3], %s16
      %s19 = sshll.u32 [#allocation2], 4
      %s20 = int_to_ptr.vmem [resolvable:$true] %s19
      %22 = dma.hbm_to_vmem [thread:$0]  %s0, 128, %s20, [#allocation3]
    $region5: #{tpu_custom_call.1} parent=1 // pred_fallthru
      _
    // Predicated region
    $region6: #{tpu_custom_call.1} parent=1 // pred_check
      _
    $region7: #{tpu_custom_call.1} parent=1 // pred_check_branch
      %24 = sbr.rel (0) target = $region9
    $region8: #{tpu_custom_call.1} parent=1 // pred_region
      %s26 = ssub.s32 256, 256
      %27 = vsyncadd [#allocation6], %s26
      %s28 = sshll.u32 [#allocation5], 4
      %s29 = int_to_ptr.vmem [resolvable:$true] %s28
      %34 = dma.hbm_to_vmem [thread:$0]  %s1, 256, %s29, [#allocation6], 128, 128, 8
    $region9: #{tpu_custom_call.1} parent=1 // pred_fallthru
      _
    // Predicated region
    $region10: #{tpu_custom_call.1} parent=1 // pred_check
      _
    $region11: #{tpu_custom_call.1} parent=1 // pred_check_branch
      %36 = sbr.rel (0) target = $region13
    $region12: #{tpu_custom_call.1} parent=1 // pred_region
      _
    $region13: #{tpu_custom_call.1} parent=1 // pred_fallthru
      _
    // Predicated region
    $region14: #{tpu_custom_call.1} parent=1 // pred_check
      _
    $region15: #{tpu_custom_call.1} parent=1 // pred_check_branch
      %38 = sbr.rel (0) target = $region17
    $region16: #{tpu_custom_call.1} parent=1 // pred_region
      %s40 = ssub.s32 256, 256
      %41 = vsyncadd [#allocation6], %s40
      %s42 = sshll.u32 [#allocation7], 4
      %s43 = int_to_ptr.vmem [resolvable:$true] %s42
      %48 = dma.hbm_to_vmem [thread:$0]  %s3, 256, %s43, [#allocation6], 128, 128, 8
    $region17: #{tpu_custom_call.1} parent=1 // pred_fallthru
      _
    // Predicated region
    $region18: #{tpu_custom_call.1} parent=1 // pred_check
      _
    $region19: #{tpu_custom_call.1} parent=1 // pred_check_branch
      %50 = sbr.rel (0) target = $region21
    $region20: #{tpu_custom_call.1} parent=1 // pred_region
      _
    $region21: #{tpu_custom_call.1} parent=1 // pred_fallthru
      _
    // Predicated region
    $region22: #{tpu_custom_call.1} parent=1 // pred_check
      _
    $region23: #{tpu_custom_call.1} parent=1 // pred_check_branch
      %52 = sbr.rel (0) target = $region25
    $region24: #{tpu_custom_call.1} parent=1 // pred_region
      %53 = dma.done [#allocation3], 128
    $region25: #{tpu_custom_call.1} parent=1 // pred_fallthru
      _
    // Predicated region
    $region26: #{tpu_custom_call.1} parent=1 // pred_check
      _
    $region27: #{tpu_custom_call.1} parent=1 // pred_check_branch
      %55 = sbr.rel (0) target = $region29
    $region28: #{tpu_custom_call.1} parent=1 // pred_region
      %56 = dma.done [#allocation6], 256
    $region29: #{tpu_custom_call.1} parent=1 // pred_fallthru
      _
    // Predicated region
    $region30: #{tpu_custom_call.1} parent=1 // pred_check
      _
    $region31: #{tpu_custom_call.1} parent=1 // pred_check_branch
      %58 = sbr.rel (0) target = $region33
    $region32: #{tpu_custom_call.1} parent=1 // pred_region
      %59 = dma.done [#allocation6], 256
    $region33: #{tpu_custom_call.1} parent=1 // pred_fallthru
      _
    %v60 = vld [vmem:[#allocation2] sm:$0xff]
    %v61 = vld [vmem:[#allocation5] sm:$0xff]
    %v62 = vld [vmem:[#allocation5 + $0x8] sm:$0xff]
    %v63 = vld [vmem:[%s2] sm:$0x1]
    %v65 = vlaneseq
    %v66 = vshrl.u32 %v65, 7
    %v67 = vsub.s32 0, %v66
    %v68 = vrot.slane %v63, %v67
    %vm70 = vcmask 261120
    %v72 = vsel %vm70, %v60, 0
    %v75 = vsel %vm70, %v61, 0
    %v78 = vsel %vm70, %v62, 0
    %80 = vmatprep.subr.mxu0 0.0
    %81 = vmatpush1.xpose.msra.mxu0 0.0
    %82 = vmatprep.subr.mxu0 0.0
    %83 = vmatpush1.xpose.msra.mxu0 0.0
    %84 = vmatprep.subr.mxu0 0.0
    %85 = vmatpush1.xpose.msra.mxu0 0.0
    %86 = vmatprep.subr.mxu0 0.0
    %87 = vmatpush1.xpose.msra.mxu0 0.0
    %88 = vmatprep.subr.mxu0 0.0
    %89 = vmatpush1.xpose.msra.mxu0 0.0
    %90 = vmatprep.subr.mxu0 0.0
    %91 = vmatpush1.xpose.msra.mxu0 0.0
    %92 = vmatprep.subr.mxu0 0.0
    %93 = vmatpush1.xpose.msra.mxu0 0.0
    %94 = vmatprep.subr.mxu0 0.0
    %95 = vmatpush1.xpose.msra.mxu0 0.0
    %96 = vmatprep.subr.mxu0 0.0
    %97 = vmatpush1.xpose.msra.mxu0 0.0
    %98 = vmatprep.subr.mxu0 0.0
    %99 = vmatpush1.xpose.msra.mxu0 0.0
    %100 = vmatprep.subr.mxu0 0.0
    %101 = vmatpush1.xpose.msra.mxu0 0.0
    %102 = vmatprep.subr.mxu0 0.0
    %103 = vmatpush1.xpose.msra.mxu0 0.0
    %104 = vmatprep.subr.mxu0 0.0
    %105 = vmatpush1.xpose.msra.mxu0 0.0
    %106 = vmatprep.subr.mxu0 0.0
    %107 = vmatpush1.xpose.msra.mxu0 0.0
    %108 = vmatprep.subr.mxu0 0.0
    %109 = vmatpush1.xpose.msra.mxu0 %v78
    %110 = vmatprep.subr.mxu0 0.0
    %111 = vmatpush1.xpose.msra.mxu0 %v75
    %112 = vmatprep.subr.mxu0 0.0
    %113 = vmatpush2.xpose.msra.mxu0 0.0
    %114 = vmatprep.subr.mxu0 0.0
    %115 = vmatpush2.xpose.msra.mxu0 0.0
    %116 = vmatprep.subr.mxu0 0.0
    %117 = vmatpush2.xpose.msra.mxu0 0.0
    %118 = vmatprep.subr.mxu0 0.0
    %119 = vmatpush2.xpose.msra.mxu0 0.0
    %120 = vmatprep.subr.mxu0 0.0
    %121 = vmatpush2.xpose.msra.mxu0 0.0
    %122 = vmatprep.subr.mxu0 0.0
    %123 = vmatpush2.xpose.msra.mxu0 0.0
    %124 = vmatprep.subr.mxu0 0.0
    %125 = vmatpush2.xpose.msra.mxu0 0.0
    %126 = vmatprep.subr.mxu0 0.0
    %127 = vmatpush2.xpose.msra.mxu0 0.0
    %128 = vmatprep.subr.mxu0 0.0
    %129 = vmatpush2.xpose.msra.mxu0 0.0
    %130 = vmatprep.subr.mxu0 0.0
    %131 = vmatpush2.xpose.msra.mxu0 0.0
    %132 = vmatprep.subr.mxu0 0.0
    %133 = vmatpush2.xpose.msra.mxu0 0.0
    %134 = vmatprep.subr.mxu0 0.0
    %135 = vmatpush2.xpose.msra.mxu0 0.0
    %136 = vmatprep.subr.mxu0 0.0
    %137 = vmatpush2.xpose.msra.mxu0 0.0
    %138 = vmatprep.subr.mxu0 0.0
    %139 = vmatpush2.xpose.msra.mxu0 0.0
    %140 = vmatprep.subr.mxu0 0.0
    %141 = vmatpush2.xpose.msra.mxu0 0.0
    %142 = vmatprep.subr.mxu0 0.0
    %143 = vmatpush2.xpose.msra.mxu0 0.0
    %144 = vmatprep.mubr.f32.mxu0 0.0
    %145 = vmatmul.mubr.f32.gmra.mxu0 %v72
    %v146 = vpop.f32.mrf.mxu0
    %v147 = vadd.f32 %v68, %v146
    %v148 = vpop.f32.mrf.mxu0
    %149 = vdwg.mxu0
    %v150 = vmax.f32 %v147, 0.0
    %v151 = vld [vmem:[#allocation7] sm:$0xff]
    %v152 = vld [vmem:[#allocation7 + $0x8] sm:$0xff]
    %v153 = vld [vmem:[%s4] sm:$0x1]
    %v155 = vlaneseq
    %v156 = vshrl.u32 %v155, 7
    %v157 = vsub.s32 0, %v156
    %v158 = vrot.slane %v153, %v157
    %vm160 = vcmask 130048
    %v162 = vsel %vm160, %v150, 0
    %v165 = vsel %vm160, %v151, 0
    %v168 = vsel %vm160, %v152, 0
    %170 = vmatprep.subr.mxu0 0.0
    %171 = vmatpush1.xpose.msra.mxu0 0.0
    %172 = vmatprep.subr.mxu0 0.0
    %173 = vmatpush1.xpose.msra.mxu0 0.0
    %174 = vmatprep.subr.mxu0 0.0
    %175 = vmatpush1.xpose.msra.mxu0 0.0
    %176 = vmatprep.subr.mxu0 0.0
    %177 = vmatpush1.xpose.msra.mxu0 0.0
    %178 = vmatprep.subr.mxu0 0.0
    %179 = vmatpush1.xpose.msra.mxu0 0.0
    %180 = vmatprep.subr.mxu0 0.0
    %181 = vmatpush1.xpose.msra.mxu0 0.0
    %182 = vmatprep.subr.mxu0 0.0
    %183 = vmatpush1.xpose.msra.mxu0 0.0
    %184 = vmatprep.subr.mxu0 0.0
    %185 = vmatpush1.xpose.msra.mxu0 0.0
    %186 = vmatprep.subr.mxu0 0.0
    %187 = vmatpush1.xpose.msra.mxu0 0.0
    %188 = vmatprep.subr.mxu0 0.0
    %189 = vmatpush1.xpose.msra.mxu0 0.0
    %190 = vmatprep.subr.mxu0 0.0
    %191 = vmatpush1.xpose.msra.mxu0 0.0
    %192 = vmatprep.subr.mxu0 0.0
    %193 = vmatpush1.xpose.msra.mxu0 0.0
    %194 = vmatprep.subr.mxu0 0.0
    %195 = vmatpush1.xpose.msra.mxu0 0.0
    %196 = vmatprep.subr.mxu0 0.0
    %197 = vmatpush1.xpose.msra.mxu0 0.0
    %198 = vmatprep.subr.mxu0 0.0
    %199 = vmatpush1.xpose.msra.mxu0 %v168
    %200 = vmatprep.subr.mxu0 0.0
    %201 = vmatpush1.xpose.msra.mxu0 %v165
    %202 = vmatprep.subr.mxu0 0.0
    %203 = vmatpush2.xpose.msra.mxu0 0.0
    %204 = vmatprep.subr.mxu0 0.0
    %205 = vmatpush2.xpose.msra.mxu0 0.0
    %206 = vmatprep.subr.mxu0 0.0
    %207 = vmatpush2.xpose.msra.mxu0 0.0
    %208 = vmatprep.subr.mxu0 0.0
    %209 = vmatpush2.xpose.msra.mxu0 0.0
    %210 = vmatprep.subr.mxu0 0.0
    %211 = vmatpush2.xpose.msra.mxu0 0.0
    %212 = vmatprep.subr.mxu0 0.0
    %213 = vmatpush2.xpose.msra.mxu0 0.0
    %214 = vmatprep.subr.mxu0 0.0
    %215 = vmatpush2.xpose.msra.mxu0 0.0
    %216 = vmatprep.subr.mxu0 0.0
    %217 = vmatpush2.xpose.msra.mxu0 0.0
    %218 = vmatprep.subr.mxu0 0.0
    %219 = vmatpush2.xpose.msra.mxu0 0.0
    %220 = vmatprep.subr.mxu0 0.0
    %221 = vmatpush2.xpose.msra.mxu0 0.0
    %222 = vmatprep.subr.mxu0 0.0
    %223 = vmatpush2.xpose.msra.mxu0 0.0
    %224 = vmatprep.subr.mxu0 0.0
    %225 = vmatpush2.xpose.msra.mxu0 0.0
    %226 = vmatprep.subr.mxu0 0.0
    %227 = vmatpush2.xpose.msra.mxu0 0.0
    %228 = vmatprep.subr.mxu0 0.0
    %229 = vmatpush2.xpose.msra.mxu0 0.0
    %230 = vmatprep.subr.mxu0 0.0
    %231 = vmatpush2.xpose.msra.mxu0 0.0
    %232 = vmatprep.subr.mxu0 0.0
    %233 = vmatpush2.xpose.msra.mxu0 0.0
    %234 = vmatprep.mubr.f32.mxu0 0.0
    %235 = vmatmul.mubr.f32.gmra.mxu0 %v162
    %v236 = vpop.f32.mrf.mxu0
    %v237 = vadd.f32 %v158, %v236
    %v238 = vpop.f32.mrf.mxu0
    %239 = vdwg.mxu0
    %240 = vst.msk [vmem:[#allocation8] sm:$0xff] %vm160, %v237
    // Predicated region
    $region34: #{tpu_custom_call.1} parent=1 // pred_check
      _
    $region35: #{tpu_custom_call.1} parent=1 // pred_check_branch
      %242 = sbr.rel (0) target = $region37
    $region36: #{tpu_custom_call.1} parent=1 // pred_region
      %s244 = ssub.s32 128, 128
      %245 = vsyncadd [#allocation4], %s244
      %s247 = sshll.u32 [#allocation8], 4
      %s248 = int_to_ptr.vmem [resolvable:$true] %s247
      %250 = dma.vmem_to_hbm [thread:$0]  %s248, 128, %s5, [#allocation4]
    $region37: #{tpu_custom_call.1} parent=1 // pred_fallthru
      _
    // Predicated region
    $region38: #{tpu_custom_call.1} parent=1 // pred_check
      _
    $region39: #{tpu_custom_call.1} parent=1 // pred_check_branch
      %252 = sbr.rel (0) target = $region41
    $region40: #{tpu_custom_call.1} parent=1 // pred_region
      %253 = dma.done [#allocation4], 128
    $region41: #{tpu_custom_call.1} parent=1 // pred_fallthru
      _
    %254 = vsyncpa [#allocation3], 1
    %255 = vsyncpa [#allocation6], 1
    %256 = vsyncpa [#allocation4], 1

</llo_original>
